<compile_context>
chip_gen: v7x
topology: tpu7x:2x2x1
jax: 0.10.0
libtpu: 0.0.40
codegen_flags: <defaults>
</compile_context>

<pallas_src>
import functools

import jax
import jax.numpy as jnp
from jax.experimental import pallas as pl
from jax.experimental.pallas import tpu as pltpu

EPS = 1e-5


# ---------------------------------------------------------------------------
# VMEM / tiling configuration
# ---------------------------------------------------------------------------

def _vmem_config():
    """Return (vmem_limit_bytes, x_block_budget_bytes) per TPU generation."""
    cap = 64 * 1024 * 1024
    try:
        info = pltpu.get_tpu_info()
        cap = int(getattr(info, "vmem_capacity_bytes", cap) or cap)
    except Exception:
        pass
    if cap >= 100 * 1024 * 1024:
        # v5e / v6e (128 MiB physical).  Budget covers 2x double-buffered input
        # blocks + 2x output blocks + ~2 full-block f32 temporaries (~6x block).
        return 96 * 1024 * 1024, 8 * 1024 * 1024
    # v7x: 64 MiB physical per TensorCore -> smaller blocks, 48 MiB scoped.
    return 48 * 1024 * 1024, 6 * 1024 * 1024


def _sublane_granularity(dtype):
    # Sub-32-bit dtypes pack along sublanes: f32 -> 8, bf16 -> 16, int8/fp8 -> 32.
    return max(8, 32 // jnp.dtype(dtype).itemsize)


def _round_down(v, m):
    return (v // m) * m


def _round_up(v, m):
    return ((v + m - 1) // m) * m


def _pick_channel_tile(n, c, l, dtype, budget_bytes,
                       max_channels_per_block=None, min_grid_steps=4):
    """Channel tile for the single-pass kernel, or None -> use two-phase path."""
    itemsize = jnp.dtype(dtype).itemsize
    gran = _sublane_granularity(dtype)
    per_channel = max(1, n * l * itemsize)
    tc_fit = budget_bytes // per_channel
    if tc_fit < min(gran, c):
        return None  # even an (N, gran, L) slab does not fit -> two-phase
    tc = min(tc_fit, c)
    if max_channels_per_block is not None:
        tc = min(tc, max(int(max_channels_per_block), 1))
    # Keep a few grid steps when C is large enough so the double-buffered
    # pipeline (and the megacore split on v7x) has work to overlap.
    if c >= min_grid_steps * gran:
        tc = min(tc, _round_up(pl.cdiv(c, min_grid_steps), gran))
    if tc >= c:
        return c  # full-C block: any size is a legal (full-dim) block dim
    return max(gran, _round_down(tc, gran))


# ---------------------------------------------------------------------------
# Single-pass kernel: full (N, tc, L) channel-tile slab resident in VMEM.
# ---------------------------------------------------------------------------

def _bn_kernel(x_ref, gamma_ref, beta_ref, o_ref, *, inv_count, eps):
    f32 = jnp.float32
    x = x_ref[...]  # (N, tc, L), native dtype

    if x.dtype == f32:
        # Two-pass centered variance (best cancellation behaviour for f32).
        # Sum over N first (VALU vreg adds), then one XLU pass over L.
        s_nl = jnp.sum(x, axis=0)                                   # (tc, L)
        mean = jnp.sum(s_nl, axis=-1, keepdims=True) * inv_count    # (tc, 1)
        centered = x - mean[None]
        q_nl = jnp.sum(centered * centered, axis=0)                 # (tc, L)
        var = jnp.sum(q_nl, axis=-1, keepdims=True) * inv_count     # (tc, 1)
    else:
        # bf16 / fp8: accumulate the sums in f32 but keep the bulk data in the
        # input dtype (no full-block f32 materialization).  E[x^2]-mean^2 is
        # at input-dtype accuracy, which matches the output precision anyway.
        s_nl = jnp.sum(x, axis=0, dtype=f32)
        mean = jnp.sum(s_nl, axis=-1, keepdims=True) * inv_count
        q_nl = jnp.sum(x * x, axis=0, dtype=f32)
        msq = jnp.sum(q_nl, axis=-1, keepdims=True) * inv_count
        var = jnp.maximum(msq - mean * mean, 0.0)

    gamma = gamma_ref[...].astype(f32)               # (tc, 1)
    beta = beta_ref[...].astype(f32)                 # (tc, 1)
    a = gamma * jax.lax.rsqrt(var + eps)             # (tc, 1)
    b = beta - mean * a                              # (tc, 1)

    # y = x * a + b in the input dtype (bf16 VALU on v6e/v7x; promoted on v5e).
    a_x = a.astype(x.dtype)[None]                    # (1, tc, 1)
    b_x = b.astype(x.dtype)[None]
    o_ref[...] = (x * a_x + b_x).astype(o_ref.dtype)


def _batch_norm_single_pass(x, gamma2d, beta2d, eps, tc, vmem_limit):
    n, c, l = x.shape
    num_tiles = pl.cdiv(c, tc)
    kernel = functools.partial(_bn_kernel, inv_count=1.0 / float(n * l), eps=eps)
    return pl.pallas_call(
        kernel,
        out_shape=jax.ShapeDtypeStruct((n, c, l), x.dtype),
        grid_spec=pltpu.PrefetchScalarGridSpec(
            num_scalar_prefetch=0,
            grid=(num_tiles,),
            in_specs=[
                pl.BlockSpec((n, tc, l), lambda i: (0, i, 0)),
                pl.BlockSpec((tc, 1), lambda i: (i, 0)),
                pl.BlockSpec((tc, 1), lambda i: (i, 0)),
            ],
            out_specs=pl.BlockSpec((n, tc, l), lambda i: (0, i, 0)),
        ),
        compiler_params=pltpu.CompilerParams(
            dimension_semantics=("parallel",),
            vmem_limit_bytes=vmem_limit,
        ),
    )(x, gamma2d, beta2d)


# ---------------------------------------------------------------------------
# Two-phase fallback: (1) accumulate per-channel sum / sumsq over N tiles and
# emit a = gamma*rsqrt(var+eps), b = beta - mean*a; (2) normalize.
# ---------------------------------------------------------------------------

def _bn_stats_kernel(x_ref, gamma_ref, beta_ref, a_ref, b_ref, sum_sc, sq_sc,
                     *, inv_count, eps, n_total, tn, needs_mask):
    j = pl.program_id(1)

    @pl.when(j == 0)
    def _():
        sum_sc[...] = jnp.zeros_like(sum_sc)
        sq_sc[...] = jnp.zeros_like(sq_sc)

    x = x_ref[...]                                    # (tn, tc, L)
    if needs_mask:
        # Last N tile may be edge-padded with garbage rows: mask them out.
        row = j * tn + jax.lax.broadcasted_iota(jnp.int32, x.shape, 0)
        x = jnp.where(row < n_total, x, 0)
    xf = x.astype(jnp.float32)
    # Sum over N first (VALU), then one cross-lane pass over L (XLU).
    sum_sc[...] += jnp.sum(jnp.sum(xf, axis=0), axis=-1, keepdims=True)
    sq_sc[...] += jnp.sum(jnp.sum(xf * xf, axis=0), axis=-1, keepdims=True)

    @pl.when(j == pl.num_programs(1) - 1)
    def _():
        mean = sum_sc[...] * inv_count                               # (tc, 1)
        var = jnp.maximum(sq_sc[...] * inv_count - mean * mean, 0.0)
        gamma = gamma_ref[...].astype(jnp.float32)
        beta = beta_ref[...].astype(jnp.float32)
        a = gamma * jax.lax.rsqrt(var + eps)
        a_ref[...] = a
        b_ref[...] = beta - mean * a


def _bn_apply_kernel(x_ref, a_ref, b_ref, o_ref):
    x = x_ref[...]
    a = a_ref[...].astype(x.dtype)[None]              # (1, tc, 1)
    b = b_ref[...].astype(x.dtype)[None]
    o_ref[...] = (x * a + b).astype(o_ref.dtype)


def _batch_norm_two_phase(x, gamma2d, beta2d, eps, budget, vmem_limit):
    n, c, l = x.shape
    itemsize = jnp.dtype(x.dtype).itemsize
    gran = _sublane_granularity(x.dtype)
    tc = c if c <= gran else gran
    tn = max(1, budget // max(1, tc * l * itemsize))
    tn = min(tn, n)
    num_c = pl.cdiv(c, tc)
    num_n = pl.cdiv(n, tn)
    needs_mask = (n % tn) != 0

    stats_kernel = functools.partial(
        _bn_stats_kernel, inv_count=1.0 / float(n * l), eps=eps,
        n_total=n, tn=tn, needs_mask=needs_mask)

    a, b = pl.pallas_call(
        stats_kernel,
        out_shape=(jax.ShapeDtypeStruct((c, 1), jnp.float32),
                   jax.ShapeDtypeStruct((c, 1), jnp.float32)),
        grid_spec=pltpu.PrefetchScalarGridSpec(
            num_scalar_prefetch=0,
            grid=(num_c, num_n),
            in_specs=[
                pl.BlockSpec((tn, tc, l), lambda i, j: (j, i, 0)),
                pl.BlockSpec((tc, 1), lambda i, j: (i, 0)),
                pl.BlockSpec((tc, 1), lambda i, j: (i, 0)),
            ],
            out_specs=[
                pl.BlockSpec((tc, 1), lambda i, j: (i, 0)),
                pl.BlockSpec((tc, 1), lambda i, j: (i, 0)),
            ],
            scratch_shapes=[pltpu.VMEM((tc, 1), jnp.float32),
                            pltpu.VMEM((tc, 1), jnp.float32)],
        ),
        compiler_params=pltpu.CompilerParams(
            dimension_semantics=("parallel", "arbitrary"),
            vmem_limit_bytes=vmem_limit,
        ),
    )(x, gamma2d, beta2d)

    return pl.pallas_call(
        _bn_apply_kernel,
        out_shape=jax.ShapeDtypeStruct((n, c, l), x.dtype),
        grid_spec=pltpu.PrefetchScalarGridSpec(
            num_scalar_prefetch=0,
            grid=(num_c, num_n),
            in_specs=[
                pl.BlockSpec((tn, tc, l), lambda i, j: (j, i, 0)),
                pl.BlockSpec((tc, 1), lambda i, j: (i, 0)),
                pl.BlockSpec((tc, 1), lambda i, j: (i, 0)),
            ],
            out_specs=pl.BlockSpec((tn, tc, l), lambda i, j: (j, i, 0)),
        ),
        compiler_params=pltpu.CompilerParams(
            dimension_semantics=("parallel", "parallel"),
            vmem_limit_bytes=vmem_limit,
        ),
    )(x, a, b)


# ---------------------------------------------------------------------------
# Public wrapper
# ---------------------------------------------------------------------------

def batch_norm_1d(x, gamma, beta, eps=EPS, max_channels_per_block=None,
                  x_block_budget_bytes=None):
    """Training-mode BatchNorm1d forward.  x: (N, C, L) or (N, C)."""
    squeeze = False
    if x.ndim == 2:
        # nn.BatchNorm1d also accepts (N, C); treat it as L == 1.
        # TODO(synk): a (N, C)-native layout (C on lanes) would be faster here.
        x = x[:, :, None]
        squeeze = True
    n, c, l = x.shape

    vmem_limit, default_budget = _vmem_config()
    budget = int(x_block_budget_bytes) if x_block_budget_bytes else default_budget

    # Params as (C, 1) f32 so channel tiles land on sublanes (matches x layout).
    gamma2d = gamma.reshape(c, 1).astype(jnp.float32)
    beta2d = beta.reshape(c, 1).astype(jnp.float32)

    tc = _pick_channel_tile(n, c, l, x.dtype, budget, max_channels_per_block)
    if tc is not None:
        out = _batch_norm_single_pass(x, gamma2d, beta2d, eps, tc, vmem_limit)
    else:
        out = _batch_norm_two_phase(x, gamma2d, beta2d, eps, budget, vmem_limit)
    return out[:, :, 0] if squeeze else out


def _reference(x, gamma, beta, eps=EPS):
    mean = jnp.mean(x, axis=(0, 2), keepdims=True)
    var = jnp.mean((x - mean) ** 2, axis=(0, 2), keepdims=True)
    return (x - mean) / jnp.sqrt(var + eps) * gamma[None, :, None] + beta[None, :, None]


if __name__ == "__main__":
    key = jax.random.PRNGKey(0)
    kx, kg, kb = jax.random.split(key, 3)

    # Small shapes; L=128 keeps stores lane-dense, C=16 with tc=8 exercises a
    # real 2-step pipelined channel grid.
    N, C, L = 4, 16, 128
    x = jax.random.normal(kx, (N, C, L), dtype=jnp.float32)
    # PyTorch default init is gamma=1, beta=0; perturb so the affine path is
    # actually exercised.
    gamma = 1.0 + 0.1 * jax.random.normal(kg, (C,), dtype=jnp.float32)
    beta = 0.1 * jax.random.normal(kb, (C,), dtype=jnp.float32)

    ref = _reference(x, gamma, beta)

    # 1) Single-pass path (channel-tiled grid).
    out = jax.block_until_ready(
        batch_norm_1d(x, gamma, beta, max_channels_per_block=8))
    assert out.shape == (N, C, L)
    err = float(jnp.max(jnp.abs(out - ref)))
    assert err < 1e-4, f"single-pass mismatch vs reference: {err}"

    # 2) Force the two-phase (stats + normalize) fallback with a tiny block
    #    budget so that path (including the N-tile edge masking) is exercised.
    out2 = jax.block_until_ready(
        batch_norm_1d(x, gamma, beta, x_block_budget_bytes=12288))
    err2 = float(jnp.max(jnp.abs(out2 - ref)))
    assert err2 < 1e-4, f"two-phase mismatch vs reference: {err2}"

    print("KERNEL_OK")
</pallas_src>

<mosaic_0001>
module attributes {stable_mosaic.version = 11 : i64} {
  func.func @_bn_kernel(%arg0: i32, %arg1: memref<4x8x128xf32, #tpu.memory_space<vmem>>, %arg2: memref<8x1xf32, #tpu.memory_space<vmem>>, %arg3: memref<8x1xf32, #tpu.memory_space<vmem>>, %arg4: memref<4x8x128xf32, #tpu.memory_space<vmem>>) attributes {dimension_semantics = [#tpu.dimension_semantics<parallel>], iteration_bounds = array<i64: 2>, scalar_prefetch = 0 : i64, scratch_operands = 0 : i64, tpu.core_type = #tpu.core_type<tc>, window_params = [{transform_indices = @transform_0, window_bounds = array<i64: 4, 8, 128>}, {transform_indices = @transform_1, window_bounds = array<i64: 8, 1>}, {transform_indices = @transform_2, window_bounds = array<i64: 8, 1>}, {transform_indices = @transform_3, window_bounds = array<i64: 4, 8, 128>}]} {
    %c0 = arith.constant 0 : index
    %c0_0 = arith.constant 0 : index
    %c0_1 = arith.constant 0 : index
    %0 = vector.load %arg1[%c0, %c0_0, %c0_1] : memref<4x8x128xf32, #tpu.memory_space<vmem>>, vector<4x8x128xf32>
    %cst = arith.constant dense<0.000000e+00> : vector<8x128xf32>
    %1 = vector.multi_reduction <add>, %0, %cst [0] : vector<4x8x128xf32> to vector<8x128xf32>
    %cst_2 = arith.constant dense<0.000000e+00> : vector<8xf32>
    %2 = vector.multi_reduction <add>, %1, %cst_2 [1] : vector<8x128xf32> to vector<8xf32>
    %3 = vector.shape_cast %2 : vector<8xf32> to vector<8x1xf32>
    %cst_3 = arith.constant 0.001953125 : f32
    %4 = vector.broadcast %cst_3 : f32 to vector<8x1xf32>
    %5 = arith.mulf %3, %4 : vector<8x1xf32>
    %6 = vector.shape_cast %5 : vector<8x1xf32> to vector<1x8x1xf32>
    %7 = vector.broadcast %6 : vector<1x8x1xf32> to vector<4x8x128xf32>
    %8 = arith.subf %0, %7 : vector<4x8x128xf32>
    %9 = arith.mulf %8, %8 : vector<4x8x128xf32>
    %cst_4 = arith.constant dense<0.000000e+00> : vector<8x128xf32>
    %10 = vector.multi_reduction <add>, %9, %cst_4 [0] : vector<4x8x128xf32> to vector<8x128xf32>
    %cst_5 = arith.constant dense<0.000000e+00> : vector<8xf32>
    %11 = vector.multi_reduction <add>, %10, %cst_5 [1] : vector<8x128xf32> to vector<8xf32>
    %12 = vector.shape_cast %11 : vector<8xf32> to vector<8x1xf32>
    %cst_6 = arith.constant 0.001953125 : f32
    %13 = vector.broadcast %cst_6 : f32 to vector<8x1xf32>
    %14 = arith.mulf %12, %13 : vector<8x1xf32>
    %c0_7 = arith.constant 0 : index
    %c0_8 = arith.constant 0 : index
    %15 = vector.load %arg2[%c0_7, %c0_8] : memref<8x1xf32, #tpu.memory_space<vmem>>, vector<8x1xf32>
    %c0_9 = arith.constant 0 : index
    %c0_10 = arith.constant 0 : index
    %16 = vector.load %arg3[%c0_9, %c0_10] : memref<8x1xf32, #tpu.memory_space<vmem>>, vector<8x1xf32>
    %cst_11 = arith.constant 9.99999974E-6 : f32
    %17 = vector.broadcast %cst_11 : f32 to vector<8x1xf32>
    %18 = arith.addf %14, %17 : vector<8x1xf32>
    %19 = math.rsqrt %18 : vector<8x1xf32>
    %20 = arith.mulf %15, %19 : vector<8x1xf32>
    %21 = arith.mulf %5, %20 : vector<8x1xf32>
    %22 = arith.subf %16, %21 : vector<8x1xf32>
    %23 = vector.shape_cast %20 : vector<8x1xf32> to vector<1x8x1xf32>
    %24 = vector.shape_cast %22 : vector<8x1xf32> to vector<1x8x1xf32>
    %25 = vector.broadcast %23 : vector<1x8x1xf32> to vector<4x8x128xf32>
    %26 = arith.mulf %0, %25 : vector<4x8x128xf32>
    %27 = vector.broadcast %24 : vector<1x8x1xf32> to vector<4x8x128xf32>
    %28 = arith.addf %26, %27 : vector<4x8x128xf32>
    %c0_12 = arith.constant 0 : index
    %c0_13 = arith.constant 0 : index
    %c0_14 = arith.constant 0 : index
    %29 = vector.load %arg4[%c0_12, %c0_13, %c0_14] : memref<4x8x128xf32, #tpu.memory_space<vmem>>, vector<4x8x128xf32>
    tpu.vector_store %arg4[%c0_12, %c0_13, %c0_14], %28 {strides = array<i32>} : memref<4x8x128xf32, #tpu.memory_space<vmem>>, vector<4x8x128xf32>,
    return
  }
  func.func @transform_0(%arg0: i32) -> (i32, i32, i32) {
    %c0_i32 = arith.constant 0 : i32
    %c0_i32_0 = arith.constant 0 : i32
    %c0_i32_1 = arith.constant 0 : i32
    return %c0_i32, %arg0, %c0_i32_0 : i32, i32, i32
  }
  func.func @transform_1(%arg0: i32) -> (i32, i32) {
    %c0_i32 = arith.constant 0 : i32
    %c0_i32_0 = arith.constant 0 : i32
    return %arg0, %c0_i32 : i32, i32
  }
  func.func @transform_2(%arg0: i32) -> (i32, i32) {
    %c0_i32 = arith.constant 0 : i32
    %c0_i32_0 = arith.constant 0 : i32
    return %arg0, %c0_i32 : i32, i32
  }
  func.func @transform_3(%arg0: i32) -> (i32, i32, i32) {
    %c0_i32 = arith.constant 0 : i32
    %c0_i32_0 = arith.constant 0 : i32
    %c0_i32_1 = arith.constant 0 : i32
    return %c0_i32, %arg0, %c0_i32_0 : i32, i32, i32
  }
}

</mosaic_0001>

<llo_original>
// kernel: tpu_custom_call.1
$region0: #{tpu_custom_call.1}
  #allocation0 [shape = 'u32[]', space=smem, size = 0x4, offset = 0x4, fixed_abs, tag = 'smem constant byte address 0x4 - core index']
  #allocation1 [shape = 'u32[144,128]{1,0:T(1,128)}', space=vmem, size = 0x12000, scoped, tag = 'internal scratch']
  %s0 = inlined_call_operand.hbm [shape: f32[4,16,128], index: 0, kind: input, shape index: {}]
  %s1 = inlined_call_operand.vmem [shape: f32[16,1], index: 1, kind: input, shape index: {}]
  %s2 = inlined_call_operand.vmem [shape: f32[16,1], index: 2, kind: input, shape index: {}]
  %s3 = inlined_call_operand.hbm [shape: f32[4,16,128], index: 3, kind: output, shape index: {}]
  %s4 = sld [smem:[#allocation0]]
  $region49: #{tpu_custom_call.1} parent=0
    _
  %s6 = ssub.s32 1, %s4
  %s7 = scalar_select 0, %s6, %s4
  $region1: #{tpu_custom_call.1} parent=0
    #allocation2 [shape = 'u8[32768]{0}', space=vmem, size = 0x8000, scoped, tag = 'input window, operand 0']
    #allocation3 [shape = 's32[2]{0}', space=sflag, size = 0x8, scoped, tag = 'scoped memory for tpu_custom_call.1']
    #allocation4 [shape = 's32[2]{0}', space=sflag, size = 0x8, scoped, tag = 'scoped memory for tpu_custom_call.1']
    #allocation5 [shape = 'u8[32768]{0}', space=vmem, size = 0x8000, scoped, tag = 'output window, operand 0']
    %8 = vsyncpa [#allocation3], 0
    %s9 = scalar_lea.sflag [#allocation3], 1
    %10 = vsyncpa %s9, 0
    %11 = vsyncpa [#allocation4], 0
    %s12 = scalar_lea.sflag [#allocation4], 1
    %13 = vsyncpa %s12, 0
    loop: start=0, step=1, limit=4
    $region2: #{tpu_custom_call.1} parent=1 // loop_pre_header
      _
    $region3: #{tpu_custom_call.1} parent=1 // loop_header
      %s15 = sphi 0, %s19
      %p16 = scmp.ge.s32.totalorder %s15, 4
      %s25 = sphi 0, %s27
      %s28 = sphi 0, %s25
      %s29 = sphi 0, %s28
      %s45 = sphi 0, %s29
      %s51 = sphi 0, %s53
      %s54 = sphi 0, %s51
      %s55 = sphi 0, %s54
      %s71 = sphi 0, %s55
      %s77 = sphi 0, %s79
      %s80 = sphi 0, %s77
      %s81 = sphi 0, %s80
      %s97 = sphi 0, %s81
      %s103 = sphi 0, %s105
      %s106 = sphi 0, %s103
      %s107 = sphi 0, %s106
      %s123 = sphi 0, %s107
    $region4: #{tpu_custom_call.1} parent=1 // loop_header_branch
      %18 = sbr.rel (%p16) target = $region8
    $region5: #{tpu_custom_call.1} parent=1 // loop_body
      %s20 = ssub.s32 %s15, 1
      %s21 = ssub.s32 %s15, 2
      %s22 = sadd.s32 %s15, 1
      %s23 = ssub.s32 %s15, %s22
      %p24 = scmp.eq.s32.totalorder %s23, 0
      %s26 = sadd.s32 %s25, 1
      %s27 = scalar_select %p24, %s25, %s26
      %p30 = pneg %p24
      %p31 = scmp.eq.s32.totalorder %s15, 1
      %p32 = por %p30, %p31
      %p33 = scmp.ne.s32.totalorder %s25, %s28
      %p34 = scmp.eq.s32.totalorder %s15, 0
      %p35 = por %p33, %p34
      %p36 = scmp.ne.s32.totalorder %s25, %s28
      %p37 = scmp.eq.s32.totalorder %s20, 1
      %p38 = por %p36, %p37
      %p39 = scmp.ne.s32.totalorder %s28, %s29
      %p40 = scmp.eq.s32.totalorder %s20, 0
      %p41 = por %p39, %p40
      %p42 = scmp.ne.s32.totalorder %s28, %s29
      %p43 = scmp.eq.s32.totalorder %s21, 1
      %p44 = por %p42, %p43
      %p46 = scmp.ne.s32.totalorder %s29, %s45
      %p47 = scmp.eq.s32.totalorder %s21, 0
      %p48 = por %p46, %p47
      %s49 = ssub.s32 %s15, %s22
      %p50 = scmp.eq.s32.totalorder %s49, 0
      %s52 = sadd.s32 %s51, 1
      %s53 = scalar_select %p50, %s51, %s52
      %p56 = pneg %p50
      %p57 = scmp.eq.s32.totalorder %s15, 1
      %p58 = por %p56, %p57
      %p59 = scmp.ne.s32.totalorder %s51, %s54
      %p60 = scmp.eq.s32.totalorder %s15, 0
      %p61 = por %p59, %p60
      %p62 = scmp.ne.s32.totalorder %s51, %s54
      %p63 = scmp.eq.s32.totalorder %s20, 1
      %p64 = por %p62, %p63
      %p65 = scmp.ne.s32.totalorder %s54, %s55
      %p66 = scmp.eq.s32.totalorder %s20, 0
      %p67 = por %p65, %p66
      %p68 = scmp.ne.s32.totalorder %s54, %s55
      %p69 = scmp.eq.s32.totalorder %s21, 1
      %p70 = por %p68, %p69
      %p72 = scmp.ne.s32.totalorder %s55, %s71
      %p73 = scmp.eq.s32.totalorder %s21, 0
      %p74 = por %p72, %p73
      %s75 = ssub.s32 %s15, %s22
      %p76 = scmp.eq.s32.totalorder %s75, 0
      %s78 = sadd.s32 %s77, 1
      %s79 = scalar_select %p76, %s77, %s78
      %p82 = pneg %p76
      %p83 = scmp.eq.s32.totalorder %s15, 1
      %p84 = por %p82, %p83
      %p85 = scmp.ne.s32.totalorder %s77, %s80
      %p86 = scmp.eq.s32.totalorder %s15, 0
      %p87 = por %p85, %p86
      %p88 = scmp.ne.s32.totalorder %s77, %s80
      %p89 = scmp.eq.s32.totalorder %s20, 1
      %p90 = por %p88, %p89
      %p91 = scmp.ne.s32.totalorder %s80, %s81
      %p92 = scmp.eq.s32.totalorder %s20, 0
      %p93 = por %p91, %p92
      %p94 = scmp.ne.s32.totalorder %s80, %s81
      %p95 = scmp.eq.s32.totalorder %s21, 1
      %p96 = por %p94, %p95
      %p98 = scmp.ne.s32.totalorder %s81, %s97
      %p99 = scmp.eq.s32.totalorder %s21, 0
      %p100 = por %p98, %p99
      %s101 = ssub.s32 %s15, %s22
      %p102 = scmp.eq.s32.totalorder %s101, 0
      %s104 = sadd.s32 %s103, 1
      %s105 = scalar_select %p102, %s103, %s104
      %p108 = pneg %p102
      %p109 = scmp.eq.s32.totalorder %s15, 1
      %p110 = por %p108, %p109
      %p111 = scmp.ne.s32.totalorder %s103, %s106
      %p112 = scmp.eq.s32.totalorder %s15, 0
      %p113 = por %p111, %p112
      %p114 = scmp.ne.s32.totalorder %s103, %s106
      %p115 = scmp.eq.s32.totalorder %s20, 1
      %p116 = por %p114, %p115
      %p117 = scmp.ne.s32.totalorder %s106, %s107
      %p118 = scmp.eq.s32.totalorder %s20, 0
      %p119 = por %p117, %p118
      %p120 = scmp.ne.s32.totalorder %s106, %s107
      %p121 = scmp.eq.s32.totalorder %s21, 1
      %p122 = por %p120, %p121
      %p124 = scmp.ne.s32.totalorder %s107, %s123
      %p125 = scmp.eq.s32.totalorder %s21, 0
      %p126 = por %p124, %p125
      %p127 = scmp.le.s32.totalorder 1, %s15
      %p128 = scmp.lt.s32.totalorder %s15, 3
      %p129 = pnand %p127, %p128
      %p130 = pneg %p129
      // Predicated region
      $region9: #{tpu_custom_call.1} parent=5 // pred_check
        _
      $region10: #{tpu_custom_call.1} parent=5 // pred_check_branch
        %132 = sbr.rel (%p129) target = $region12
      $region11: #{tpu_custom_call.1} parent=5 // pred_region
        %s133 = ssub.s32 %s15, 1
      $region12: #{tpu_custom_call.1} parent=5 // pred_fallthru
        _
      %p134 = scmp.lt.s32.totalorder %s15, 2
      // Predicated region
      $region13: #{tpu_custom_call.1} parent=5 // pred_check
        %p135 = pneg %p134
      $region14: #{tpu_custom_call.1} parent=5 // pred_check_branch
        %137 = sbr.rel (%p135) target = $region16
      $region15: #{tpu_custom_call.1} parent=5 // pred_region
        // Predicated region
        $region17: #{tpu_custom_call.1} parent=15 // pred_check
          %p138 = pneg %p35
        $region18: #{tpu_custom_call.1} parent=15 // pred_check_branch
          %140 = sbr.rel (%p138) target = $region20
        $region19: #{tpu_custom_call.1} parent=15 // pred_region
          %s141 = sand.u32 %s25, 1
          %s142 = scalar_lea.sflag [#allocation3], %s141
          %s143 = sand.u32 %s25, 1
          %s144 = smul.addr %s143, 32
          %s145 = scalar_lea.vmem [#allocation2], %s144
          %s147 = ssub.s32 512, 512
          %148 = vsyncadd %s142, %s147
          %s149 = smul.addr %s15, 128
          %s150 = scalar_lea.hbm %s0, %s149
          %s151 = sshll.u32 %s145, 4
          %s152 = int_to_ptr.vmem [resolvable:$true] %s151
          %157 = dma.hbm_to_vmem [thread:$0]  %s150, 512, %s152, %s142, 256, 128, 8
        $region20: #{tpu_custom_call.1} parent=15 // pred_fallthru
          _
        // Predicated region
        $region21: #{tpu_custom_call.1} parent=15 // pred_check
          %p158 = pneg %p61
        $region22: #{tpu_custom_call.1} parent=15 // pred_check_branch
          %160 = sbr.rel (%p158) target = $region24
        $region23: #{tpu_custom_call.1} parent=15 // pred_region
          %p161 = scmp.lt.s32.totalorder %s15, 1
          %s162 = scalar_select %p161, %s15, 1
          %s163 = smul.addr %s162, 8
          %s164 = scalar_lea.vmem %s1, %s163
        $region24: #{tpu_custom_call.1} parent=15 // pred_fallthru
          _
        // Predicated region
        $region25: #{tpu_custom_call.1} parent=15 // pred_check
          %p165 = pneg %p87
        $region26: #{tpu_custom_call.1} parent=15 // pred_check_branch
          %167 = sbr.rel (%p165) target = $region28
        $region27: #{tpu_custom_call.1} parent=15 // pred_region
          %p168 = scmp.lt.s32.totalorder %s15, 1
          %s169 = scalar_select %p168, %s15, 1
          %s170 = smul.addr %s169, 8
          %s171 = scalar_lea.vmem %s2, %s170
        $region28: #{tpu_custom_call.1} parent=15 // pred_fallthru
          _
      $region16: #{tpu_custom_call.1} parent=5 // pred_fallthru
        _
      %p172 = scmp.le.s32.totalorder 1, %s15
      %p173 = scmp.lt.s32.totalorder %s15, 3
      %p174 = pnand %p172, %p173
      %p175 = pneg %p174
      // Predicated region
      $region29: #{tpu_custom_call.1} parent=5 // pred_check
        _
      $region30: #{tpu_custom_call.1} parent=5 // pred_check_branch
        %177 = sbr.rel (%p174) target = $region32
      $region31: #{tpu_custom_call.1} parent=5 // pred_region
        %s178 = ssub.s32 %s15, 1
        %s179 = sand.u32 %s28, 1
        %s180 = scalar_lea.sflag [#allocation3], %s179
        %s181 = sand.u32 %s28, 1
        %s182 = smul.addr %s181, 32
        %s183 = scalar_lea.vmem [#allocation2], %s182
        // Predicated region
        $region33: #{tpu_custom_call.1} parent=31 // pred_check
          %p184 = pneg %p41
        $region34: #{tpu_custom_call.1} parent=31 // pred_check_branch
          %186 = sbr.rel (%p184) target = $region36
        $region35: #{tpu_custom_call.1} parent=31 // pred_region
          %187 = dma.done %s180, 512
        $region36: #{tpu_custom_call.1} parent=31 // pred_fallthru
          _
        %s188 = sand.u32 %s28, 1
        %s189 = scalar_lea.sflag [#allocation3], %s188
        %s190 = sand.u32 %s28, 1
        %s191 = smul.addr %s190, 32
        %s192 = scalar_lea.vmem [#allocation2], %s191
        %p193 = pneg %p41
        %p194 = pneg %p38
        %p195 = scmp.lt.s32.totalorder %s20, 1
        %s196 = scalar_select %p195, %s20, 1
        %s197 = smul.addr %s196, 8
        %s198 = scalar_lea.vmem %s1, %s197
        %p199 = pneg %p67
        %p200 = pneg %p64
        %p201 = scmp.lt.s32.totalorder %s20, 1
        %s202 = scalar_select %p201, %s20, 1
        %s203 = smul.addr %s202, 8
        %s204 = scalar_lea.vmem %s2, %s203
        %p205 = pneg %p93
        %p206 = pneg %p90
        %p207 = pneg %p119
        %p208 = pneg %p116
        %s209 = sand.u32 %s106, 1
        %s210 = scalar_lea.sflag [#allocation4], %s209
        %s211 = sand.u32 %s106, 1
        %s212 = smul.addr %s211, 32
        %s213 = scalar_lea.vmem [#allocation5], %s212
        %p214 = scmp.lt.s32.totalorder %s20, 1
        %s215 = scalar_select %p214, %s20, 1
        %s216 = smul.addr %s215, 8
        %s217 = scalar_lea.vmem %s1, %s216
        %p218 = scmp.lt.s32.totalorder %s20, 1
        %s219 = scalar_select %p218, %s20, 1
        %s220 = smul.addr %s219, 8
        %s221 = scalar_lea.vmem %s2, %s220
        %v222 = vld [vmem:[%s183] sm:$0xff]
        %v223 = vld [vmem:[%s183 + $0x8] sm:$0xff]
        %v224 = vld [vmem:[%s183 + $0x10] sm:$0xff]
        %v225 = vld [vmem:[%s183 + $0x18] sm:$0xff]
        %v226 = vadd.f32 %v222, %v223
        %v227 = vadd.f32 %v226, %v224
        %v228 = vadd.f32 %v227, %v225
        %229 = vadd.xlane.f32.xlu0 %v228
        %v230 = vpop.xlane.xlu0 %229
        %v231 = vmul.f32 %v230, 0.001953125
        %v232 = vsub.f32 %v222, %v231
        %v233 = vsub.f32 %v223, %v231
        %v234 = vsub.f32 %v224, %v231
        %v235 = vsub.f32 %v225, %v231
        %v236 = vmul.f32 %v232, %v232
        %v237 = vmul.f32 %v233, %v233
        %v238 = vmul.f32 %v234, %v234
        %v239 = vmul.f32 %v235, %v235
        %v240 = vadd.f32 %v236, %v237
        %v241 = vadd.f32 %v240, %v238
        %v242 = vadd.f32 %v241, %v239
        %243 = vadd.xlane.f32.xlu0 %v242
        %v244 = vpop.xlane.xlu0 %243
        %v245 = vmul.f32 %v244, 0.001953125
        %v246 = vld [vmem:[%s217] sm:$0xff]
        %v247 = vld [vmem:[%s221] sm:$0xff]
        %v248 = vadd.f32 %v245, 1e-05
        %v249 = vrsqrt.pop %v248
        %v250 = vmul.f32 %v246, %v249
        %v251 = vmul.f32 %v231, %v250
        %v252 = vsub.f32 %v247, %v251
        %254 = vset.pattern.permute.xlu0 0
        %255 = vperm.xlu0 %254, %v250
        %v256 = vpop.permute.xlu0 %255
        %v258 = vmul.f32 %v222, %v256
        %v259 = vmul.f32 %v223, %v256
        %v260 = vmul.f32 %v224, %v256
        %v261 = vmul.f32 %v225, %v256
        %263 = vset.pattern.permute.xlu0 0
        %264 = vperm.xlu0 %263, %v252
        %v265 = vpop.permute.xlu0 %264
        %v267 = vadd.f32 %v258, %v265
        %v268 = vadd.f32 %v259, %v265
        %v269 = vadd.f32 %v260, %v265
        %v270 = vadd.f32 %v261, %v265
        %271 = vst [vmem:[%s213] sm:$0xff] %v267
        %272 = vst [vmem:[%s213 + $0x8] sm:$0xff] %v268
        %273 = vst [vmem:[%s213 + $0x10] sm:$0xff] %v269
        %274 = vst [vmem:[%s213 + $0x18] sm:$0xff] %v270
        %s275 = sand.u32 %s106, 1
        %s276 = scalar_lea.sflag [#allocation4], %s275
        %s277 = sand.u32 %s106, 1
        %s278 = smul.addr %s277, 32
        %s279 = scalar_lea.vmem [#allocation5], %s278
        // Predicated region
        $region37: #{tpu_custom_call.1} parent=31 // pred_check
          %p280 = pneg %p116
        $region38: #{tpu_custom_call.1} parent=31 // pred_check_branch
          %282 = sbr.rel (%p280) target = $region40
        $region39: #{tpu_custom_call.1} parent=31 // pred_region
          %s284 = ssub.s32 512, 512
          %285 = vsyncadd %s276, %s284
          %s286 = smul.addr %s20, 128
          %s287 = scalar_lea.hbm %s3, %s286
          %s288 = sshll.u32 %s279, 4
          %s289 = int_to_ptr.vmem [resolvable:$true] %s288
          %294 = dma.vmem_to_hbm [thread:$0]  %s289, 512, %s287, %s276, 128, 256, 8
        $region40: #{tpu_custom_call.1} parent=31 // pred_fallthru
          _
      $region32: #{tpu_custom_call.1} parent=5 // pred_fallthru
        _
      %p295 = scmp.le.s32.totalorder 2, %s15
      // Predicated region
      $region41: #{tpu_custom_call.1} parent=5 // pred_check
        %p296 = pneg %p295
      $region42: #{tpu_custom_call.1} parent=5 // pred_check_branch
        %298 = sbr.rel (%p296) target = $region44
      $region43: #{tpu_custom_call.1} parent=5 // pred_region
        %s299 = ssub.s32 %s15, 2
        // Predicated region
        $region45: #{tpu_custom_call.1} parent=43 // pred_check
          %p300 = pneg %p122
        $region46: #{tpu_custom_call.1} parent=43 // pred_check_branch
          %302 = sbr.rel (%p300) target = $region48
        $region47: #{tpu_custom_call.1} parent=43 // pred_region
          %s303 = sand.u32 %s107, 1
          %s304 = scalar_lea.sflag [#allocation4], %s303
          %s305 = sand.u32 %s107, 1
          %s306 = smul.addr %s305, 32
          %s307 = scalar_lea.vmem [#allocation5], %s306
          %308 = dma.done %s304, 512
        $region48: #{tpu_custom_call.1} parent=43 // pred_fallthru
          _
      $region44: #{tpu_custom_call.1} parent=5 // pred_fallthru
        _
    $region6: #{tpu_custom_call.1} parent=1 // loop_footer
      %s19 = sadd.s32 1, %s15
    $region7: #{tpu_custom_call.1} parent=1 // loop_footer_branch
      %14 = sbr.rel target = $region3
    $region8: #{tpu_custom_call.1} parent=1 // loop_exit
      _
    %309 = vsyncpa [#allocation3], 1
    %s310 = scalar_lea.sflag [#allocation3], 1
    %311 = vsyncpa %s310, 1
    %312 = vsyncpa [#allocation4], 1
    %s313 = scalar_lea.sflag [#allocation4], 1
    %314 = vsyncpa %s313, 1

</llo_original>
